<compile_context>
chip_gen: v6e
topology: v6e:2x2x1
jax: 0.10.0
libtpu: 0.0.40
codegen_flags: <defaults>
</compile_context>

<pallas_src>
import functools
import math

import jax
import jax.numpy as jnp
from jax import lax
from jax.experimental import pallas as pl
from jax.experimental.pallas import tpu as pltpu

BN_EPS = 1e-5
LANE = 128
SUBLANE = 8


def _round_up(x, m):
    return (x + m - 1) // m * m


def _act(x):
    # assumed ReLU (see TODO above)
    return jnp.maximum(x, 0.0)


def _vmem_target_bytes():
    """~85% of physical VMEM for this generation (fallback: 54 MiB)."""
    try:
        info = pltpu.get_tpu_info()
        cap = int(getattr(info, "vmem_capacity_bytes", 64 << 20))
    except Exception:
        cap = 64 << 20
    return int(cap * 0.85)


def _pick_batch_tile(batch, block_b):
    """Pick batch tile: no 16x padding for tiny batches, >=2 tiles for medium
    batches (feeds both v7x TensorCores), block_b for large batches."""
    batch = max(batch, 1)
    if batch >= 2 * block_b:
        return block_b
    if batch > LANE:
        # split into (at least) two tiles of roughly half the batch
        return _round_up((batch + 1) // 2, SUBLANE)
    return _round_up(batch, SUBLANE)


# ---------------------------------------------------------------------------
# Kernel
# ---------------------------------------------------------------------------
def resnet_like_kernel(
    x_ref,                       # (TB, IN_P)             bf16
    fc1_w_ref, fc1_b_ref,        # (IN_P, D_P) bf16, (1, D_P) f32
    w1_ref, b1_ref,              # (L, D_P, DH_P) bf16, (L, 1, DH_P) f32   (BN folded in)
    w2_ref, b2_ref,              # (L, DH_P, D_P) bf16, (L, 1, D_P) f32
    norm_s_ref, norm_b_ref,      # (1, D_P) f32 x2        (inv_std folded into scale)
    fcl_w_ref, fcl_b_ref,        # (D_P, NC_P) bf16, (1, NC_P) f32
    out_ref,                     # (TB, NC_P)             f32
):
    n_layers = w1_ref.shape[0]

    # x = self.fc1(x)   -- bf16 MXU operands, f32 accumulation
    h = jnp.dot(x_ref[...], fc1_w_ref[...],
                preferred_element_type=jnp.float32) + fc1_b_ref[...]

    # residual BasicBlocks; BN scale/shift is pre-folded into w1/b1.
    def block(i, h):
        o = jnp.dot(h.astype(jnp.bfloat16), w1_ref[i],
                    preferred_element_type=jnp.float32) + b1_ref[i]          # bn0+fc1
        o = _act(o)                                                          # act (dropout = id)
        o = jnp.dot(o.astype(jnp.bfloat16), w2_ref[i],
                    preferred_element_type=jnp.float32) + b2_ref[i]          # fc2 (dropout = id)
        return o + h                                                         # residual add

    if n_layers <= 8:
        for i in range(n_layers):                 # small & static -> unrolled
            h = block(i, h)
    else:
        h = lax.fori_loop(0, n_layers, block, h)  # bounds live ranges for deep models

    # x = self.activation(self.norm(x))
    h = _act(h * norm_s_ref[...] + norm_b_ref[...])

    # x = self.fc_last(x)
    out = jnp.dot(h.astype(jnp.bfloat16), fcl_w_ref[...],
                  preferred_element_type=jnp.float32) + fcl_b_ref[...]
    out_ref[...] = out.astype(out_ref.dtype)


# ---------------------------------------------------------------------------
# Parameter construction / preparation
# ---------------------------------------------------------------------------
def init_params(key, *, cat_num, vocab_sizes, embedding_dim, feature_num,
                n_classes, d, d_hidden_factor, n_layers):
    """Deterministic synthetic f32 parameters (shapes match the torch module,
    Linear weights stored transposed as (in, out))."""
    input_ch = feature_num - cat_num + cat_num * embedding_dim
    d_hidden = int(d * d_hidden_factor)
    keys = iter(jax.random.split(key, 64))

    def dense(k, fan_in, fan_out):
        return jax.random.normal(k, (fan_in, fan_out), jnp.float32) * (1.0 / math.sqrt(fan_in))

    params = {}
    params["embeddings"] = [
        jax.random.normal(next(keys), (int(vocab_sizes[i]) + 1, embedding_dim), jnp.float32) * 0.1
        for i in range(cat_num)
    ]
    params["fc1_w"] = dense(next(keys), input_ch, d)
    params["fc1_b"] = jax.random.normal(next(keys), (1, d), jnp.float32) * 0.01

    params["bn_g"] = jnp.stack([1.0 + 0.1 * jax.random.normal(next(keys), (1, d), jnp.float32)
                                for _ in range(n_layers)])
    params["bn_b"] = jnp.stack([0.1 * jax.random.normal(next(keys), (1, d), jnp.float32)
                                for _ in range(n_layers)])
    params["w1"] = jnp.stack([dense(next(keys), d, d_hidden) for _ in range(n_layers)])
    params["b1"] = jnp.stack([0.01 * jax.random.normal(next(keys), (1, d_hidden), jnp.float32)
                              for _ in range(n_layers)])
    params["w2"] = jnp.stack([dense(next(keys), d_hidden, d) for _ in range(n_layers)])
    params["b2"] = jnp.stack([0.01 * jax.random.normal(next(keys), (1, d), jnp.float32)
                              for _ in range(n_layers)])

    params["norm_g"] = 1.0 + 0.1 * jax.random.normal(next(keys), (1, d), jnp.float32)
    params["norm_b"] = 0.1 * jax.random.normal(next(keys), (1, d), jnp.float32)
    params["fcl_w"] = dense(next(keys), d, n_classes)
    params["fcl_b"] = 0.01 * jax.random.normal(next(keys), (1, n_classes), jnp.float32)
    return params


def prepare_params(params):
    """Pad feature dims to lane multiples (zero-pad), fold BN into the adjacent
    linear layer, and cast matmul weights to bf16.  Padded lanes stay exactly
    zero through the whole network (weights / biases / norm params padded with 0)."""
    input_ch, d = params["fc1_w"].shape
    d_hidden = params["w1"].shape[2]
    n_classes = params["fcl_w"].shape[1]

    IN_P = _round_up(input_ch, LANE)
    D_P = _round_up(d, LANE)
    DH_P = _round_up(d_hidden, LANE)
    NC_P = _round_up(n_classes, LANE)

    inv_std = 1.0 / math.sqrt(1.0 + BN_EPS)   # fresh running stats: mean=0, var=1

    # Fold per-layer bn0 (eval) into fc1 of each block:
    #   (h*bn_s + bn_b) @ w1 + b1 == h @ (bn_s^T * w1) + (bn_b @ w1 + b1)
    bn_s = params["bn_g"] * inv_std                       # (L, 1, d)
    bn_b = params["bn_b"]                                 # (L, 1, d)
    w1_eff = jnp.transpose(bn_s, (0, 2, 1)) * params["w1"]          # (L, d, dh)
    b1_eff = jnp.matmul(bn_b, params["w1"]) + params["b1"]          # (L, 1, dh)

    def pad2(a, r, c):
        return jnp.pad(a, ((0, r - a.shape[0]), (0, c - a.shape[1])))

    def pad3(a, r, c):
        return jnp.pad(a, ((0, 0), (0, r - a.shape[1]), (0, c - a.shape[2])))

    prepared = {
        "embeddings": params["embeddings"],
        "fc1_w": pad2(params["fc1_w"], IN_P, D_P).astype(jnp.bfloat16),
        "fc1_b": pad2(params["fc1_b"], 1, D_P),
        "w1": pad3(w1_eff, D_P, DH_P).astype(jnp.bfloat16),
        "b1": pad3(b1_eff, 1, DH_P),
        "w2": pad3(params["w2"], DH_P, D_P).astype(jnp.bfloat16),
        "b2": pad3(params["b2"], 1, D_P),
        "norm_s": pad2(params["norm_g"] * inv_std, 1, D_P),
        "norm_b": pad2(params["norm_b"], 1, D_P),
        "fcl_w": pad2(params["fcl_w"], D_P, NC_P).astype(jnp.bfloat16),
        "fcl_b": pad2(params["fcl_b"], 1, NC_P),
    }
    return prepared


# ---------------------------------------------------------------------------
# Forward wrapper
# ---------------------------------------------------------------------------
@functools.partial(jax.jit,
                   static_argnames=("cat_num", "do_embedding", "n_classes", "block_b"))
def resnet_like_forward(x, prepared, *, cat_num, do_embedding, n_classes, block_b=256):
    # ---- embedding / concat glue (plain JAX: pure gather + concat) ----
    if do_embedding and cat_num != 0:
        embedded = [
            jnp.take(prepared["embeddings"][i], x[:, i].astype(jnp.int32), axis=0)
            for i in range(cat_num)
        ]
        x = jnp.concatenate(embedded + [x[:, cat_num:]], axis=1)

    batch, in_ch = x.shape
    IN_P = prepared["fc1_w"].shape[0]
    D_P = prepared["fc1_w"].shape[1]
    DH_P = prepared["w1"].shape[2]
    NC_P = prepared["fcl_w"].shape[1]

    # Batch tile: tiny batches pad only to a sublane multiple, medium batches
    # split into >=2 tiles (v7x's two TCs), large batches use block_b.
    TB = _pick_batch_tile(batch, block_b)
    B_P = _round_up(max(batch, 1), TB)

    # Pad batch/features and ship activations as bf16 (the fc1 matmul already
    # consumes bf16 operands) -> half the streamed HBM traffic.
    x = jnp.pad(x.astype(jnp.float32),
                ((0, B_P - batch), (0, IN_P - in_ch))).astype(jnp.bfloat16)

    kernel_inputs = (
        x,
        prepared["fc1_w"], prepared["fc1_b"],
        prepared["w1"], prepared["b1"],
        prepared["w2"], prepared["b2"],
        prepared["norm_s"], prepared["norm_b"],
        prepared["fcl_w"], prepared["fcl_b"],
    )

    # Batch-tiled spec for activations; weights use constant index maps and are
    # single-buffered (they never change block index -> no re-DMA, 1x VMEM copy).
    def tile_map(b):
        return (b, 0)

    def weight_spec(a):
        idx = (lambda b: (0, 0, 0)) if a.ndim == 3 else (lambda b: (0, 0))
        return pl.BlockSpec(a.shape, idx, pipeline_mode=pl.Buffered(1))

    in_specs = [pl.BlockSpec((TB, IN_P), tile_map)] + [weight_spec(a) for a in kernel_inputs[1:]]
    out_specs = pl.BlockSpec((TB, NC_P), tile_map)

    # Explicit VMEM budget:
    #   single-buffered resident weights + double-buffered activation blocks
    #   + in-kernel f32 temporaries + headroom, capped at ~85% of physical VMEM.
    def nbytes(a):
        return int(a.size) * a.dtype.itemsize

    weight_bytes = sum(nbytes(a) for a in kernel_inputs[1:])        # Buffered(1)
    act_in_bytes = 2 * TB * IN_P * 2                                # bf16 input, 2 bufs
    act_out_bytes = 2 * TB * NC_P * 4                               # f32 output, 2 bufs
    scratch_bytes = 6 * TB * max(D_P, DH_P) * 4                     # f32 temporaries
    need = weight_bytes + act_in_bytes + act_out_bytes + scratch_bytes + (4 << 20)
    vmem_limit = int(min(_vmem_target_bytes(), max(need, 32 << 20)))

    out = pl.pallas_call(
        resnet_like_kernel,
        out_shape=jax.ShapeDtypeStruct((B_P, NC_P), jnp.float32),
        grid=(B_P // TB,),
        in_specs=in_specs,
        out_specs=out_specs,
        compiler_params=pltpu.CompilerParams(
            dimension_semantics=("parallel",),      # shard batch tiles on v7x's 2 TCs
            vmem_limit_bytes=vmem_limit,
        ),
    )(*kernel_inputs)

    return out[:batch, :n_classes]


# ---------------------------------------------------------------------------
# Pure-JAX reference (f32, unpadded, unfolded) for a correctness sanity check
# ---------------------------------------------------------------------------
def resnet_like_reference(x, params, *, cat_num, do_embedding):
    if do_embedding and cat_num != 0:
        emb = [jnp.take(params["embeddings"][i], x[:, i].astype(jnp.int32), axis=0)
               for i in range(cat_num)]
        x = jnp.concatenate(emb + [x[:, cat_num:]], axis=1)
    inv_std = 1.0 / math.sqrt(1.0 + BN_EPS)
    h = x @ params["fc1_w"] + params["fc1_b"]
    for i in range(params["w1"].shape[0]):
        idn = h
        hn = (h * inv_std) * params["bn_g"][i] + params["bn_b"][i]
        o = jnp.maximum(hn @ params["w1"][i] + params["b1"][i], 0.0)
        o = o @ params["w2"][i] + params["b2"][i]
        h = o + idn
    h = jnp.maximum((h * inv_std) * params["norm_g"] + params["norm_b"], 0.0)
    return h @ params["fcl_w"] + params["fcl_b"]


if __name__ == "__main__":
    # Small synthetic config consistent with the module's __init__ args.
    args = dict(
        do_embedding=True,
        cat_num=2,
        vocab_sizes=[5, 7],
        embedding_dim=4,
        feature_num=6,      # 2 categorical + 4 numeric columns
        n_classes=3,
    )
    n_layers = 2
    d = 32
    d_hidden_factor = 2.0

    key = jax.random.PRNGKey(0)
    k_param, k_cat, k_num = jax.random.split(key, 3)

    params = init_params(
        k_param,
        cat_num=args["cat_num"],
        vocab_sizes=args["vocab_sizes"],
        embedding_dim=args["embedding_dim"],
        feature_num=args["feature_num"],
        n_classes=args["n_classes"],
        d=d,
        d_hidden_factor=d_hidden_factor,
        n_layers=n_layers,
    )
    prepared = prepare_params(params)

    batch = 8
    # First cat_num columns are category indices (stored as floats, like the
    # torch module which does x[:, i].long()); the rest are numeric features.
    x_cat = jax.random.randint(
        k_cat, (batch, args["cat_num"]), 0,
        jnp.array(args["vocab_sizes"], jnp.int32) + 1
    ).astype(jnp.float32)
    x_num = jax.random.normal(k_num, (batch, args["feature_num"] - args["cat_num"]), jnp.float32)
    x = jnp.concatenate([x_cat, x_num], axis=1)   # (8, 6)

    out = resnet_like_forward(
        x, prepared,
        cat_num=args["cat_num"],
        do_embedding=args["do_embedding"],
        n_classes=args["n_classes"],
    )
    jax.block_until_ready(out)
    assert out.shape == (batch, args["n_classes"])

    # Sanity check vs. f32 reference (bf16 matmul weights/inputs -> loose tolerance).
    ref = resnet_like_reference(x, params,
                                cat_num=args["cat_num"],
                                do_embedding=args["do_embedding"])
    assert jnp.all(jnp.isfinite(out))
    assert jnp.allclose(out, ref, atol=5e-2, rtol=5e-2), \
        f"max abs diff {float(jnp.max(jnp.abs(out - ref)))}"

    print("KERNEL_OK")
</pallas_src>

<mosaic_0001>
module attributes {stable_mosaic.version = 11 : i64} {
  func.func @resnet_like_kernel(%arg0: i32, %arg1: memref<8x128xbf16, #tpu.memory_space<vmem>>, %arg2: memref<128x128xbf16, #tpu.memory_space<vmem>>, %arg3: memref<1x128xf32, #tpu.memory_space<vmem>>, %arg4: memref<2x128x128xbf16, #tpu.memory_space<vmem>>, %arg5: memref<2x1x128xf32, #tpu.memory_space<vmem>>, %arg6: memref<2x128x128xbf16, #tpu.memory_space<vmem>>, %arg7: memref<2x1x128xf32, #tpu.memory_space<vmem>>, %arg8: memref<1x128xf32, #tpu.memory_space<vmem>>, %arg9: memref<1x128xf32, #tpu.memory_space<vmem>>, %arg10: memref<128x128xbf16, #tpu.memory_space<vmem>>, %arg11: memref<1x128xf32, #tpu.memory_space<vmem>>, %arg12: memref<8x128xf32, #tpu.memory_space<vmem>>) attributes {dimension_semantics = [#tpu.dimension_semantics<parallel>], iteration_bounds = array<i64: 1>, scalar_prefetch = 0 : i64, scratch_operands = 0 : i64, tpu.core_type = #tpu.core_type<tc>, window_params = [{transform_indices = @transform_0, window_bounds = array<i64: 8, 128>}, {pipeline_mode = #tpu.pipeline_mode<synchronous>, transform_indices = @transform_1, window_bounds = array<i64: 128, 128>}, {pipeline_mode = #tpu.pipeline_mode<synchronous>, transform_indices = @transform_2, window_bounds = array<i64: 1, 128>}, {pipeline_mode = #tpu.pipeline_mode<synchronous>, transform_indices = @transform_3, window_bounds = array<i64: 2, 128, 128>}, {pipeline_mode = #tpu.pipeline_mode<synchronous>, transform_indices = @transform_4, window_bounds = array<i64: 2, 1, 128>}, {pipeline_mode = #tpu.pipeline_mode<synchronous>, transform_indices = @transform_5, window_bounds = array<i64: 2, 128, 128>}, {pipeline_mode = #tpu.pipeline_mode<synchronous>, transform_indices = @transform_6, window_bounds = array<i64: 2, 1, 128>}, {pipeline_mode = #tpu.pipeline_mode<synchronous>, transform_indices = @transform_7, window_bounds = array<i64: 1, 128>}, {pipeline_mode = #tpu.pipeline_mode<synchronous>, transform_indices = @transform_8, window_bounds = array<i64: 1, 128>}, {pipeline_mode = #tpu.pipeline_mode<synchronous>, transform_indices = @transform_9, window_bounds = array<i64: 128, 128>}, {pipeline_mode = #tpu.pipeline_mode<synchronous>, transform_indices = @transform_10, window_bounds = array<i64: 1, 128>}, {transform_indices = @transform_11, window_bounds = array<i64: 8, 128>}]} {
    %c0 = arith.constant 0 : index
    %c0_0 = arith.constant 0 : index
    %0 = vector.load %arg1[%c0, %c0_0] : memref<8x128xbf16, #tpu.memory_space<vmem>>, vector<8x128xbf16>
    %c0_1 = arith.constant 0 : index
    %c0_2 = arith.constant 0 : index
    %1 = vector.load %arg2[%c0_1, %c0_2] : memref<128x128xbf16, #tpu.memory_space<vmem>>, vector<128x128xbf16>
    %cst = arith.constant dense<0.000000e+00> : vector<8x128xf32>
    %2 = tpu.matmul %0, %1, %cst {dimension_numbers = #tpu.dot_dimension_numbers<[1], [0], [0], [1], [0, 0, 1, 1], [], []>} : vector<8x128xbf16>, vector<128x128xbf16>, vector<8x128xf32> -> vector<8x128xf32>
    %c0_3 = arith.constant 0 : index
    %c0_4 = arith.constant 0 : index
    %3 = vector.load %arg3[%c0_3, %c0_4] : memref<1x128xf32, #tpu.memory_space<vmem>>, vector<1x128xf32>
    %4 = vector.broadcast %3 : vector<1x128xf32> to vector<8x128xf32>
    %5 = arith.addf %2, %4 : vector<8x128xf32>
    %6 = arith.truncf %5 : vector<8x128xf32> to vector<8x128xbf16>
    %c0_5 = arith.constant 0 : index
    %c0_6 = arith.constant 0 : index
    %c0_7 = arith.constant 0 : index
    %7 = vector.load %arg4[%c0_5, %c0_6, %c0_7] : memref<2x128x128xbf16, #tpu.memory_space<vmem>>, vector<1x128x128xbf16>
    %8 = vector.shape_cast %7 : vector<1x128x128xbf16> to vector<128x128xbf16>
    %cst_8 = arith.constant dense<0.000000e+00> : vector<8x128xf32>
    %9 = tpu.matmul %6, %8, %cst_8 {dimension_numbers = #tpu.dot_dimension_numbers<[1], [0], [0], [1], [0, 0, 1, 1], [], []>} : vector<8x128xbf16>, vector<128x128xbf16>, vector<8x128xf32> -> vector<8x128xf32>
    %c0_9 = arith.constant 0 : index
    %c0_10 = arith.constant 0 : index
    %c0_11 = arith.constant 0 : index
    %10 = vector.load %arg5[%c0_9, %c0_10, %c0_11] : memref<2x1x128xf32, #tpu.memory_space<vmem>>, vector<1x1x128xf32>
    %11 = vector.shape_cast %10 : vector<1x1x128xf32> to vector<1x128xf32>
    %12 = vector.broadcast %11 : vector<1x128xf32> to vector<8x128xf32>
    %13 = arith.addf %9, %12 : vector<8x128xf32>
    %cst_12 = arith.constant 0.000000e+00 : f32
    %14 = vector.broadcast %cst_12 : f32 to vector<8x128xf32>
    %15 = arith.maximumf %13, %14 : vector<8x128xf32>
    %16 = arith.truncf %15 : vector<8x128xf32> to vector<8x128xbf16>
    %c0_13 = arith.constant 0 : index
    %c0_14 = arith.constant 0 : index
    %c0_15 = arith.constant 0 : index
    %17 = vector.load %arg6[%c0_13, %c0_14, %c0_15] : memref<2x128x128xbf16, #tpu.memory_space<vmem>>, vector<1x128x128xbf16>
    %18 = vector.shape_cast %17 : vector<1x128x128xbf16> to vector<128x128xbf16>
    %cst_16 = arith.constant dense<0.000000e+00> : vector<8x128xf32>
    %19 = tpu.matmul %16, %18, %cst_16 {dimension_numbers = #tpu.dot_dimension_numbers<[1], [0], [0], [1], [0, 0, 1, 1], [], []>} : vector<8x128xbf16>, vector<128x128xbf16>, vector<8x128xf32> -> vector<8x128xf32>
    %c0_17 = arith.constant 0 : index
    %c0_18 = arith.constant 0 : index
    %c0_19 = arith.constant 0 : index
    %20 = vector.load %arg7[%c0_17, %c0_18, %c0_19] : memref<2x1x128xf32, #tpu.memory_space<vmem>>, vector<1x1x128xf32>
    %21 = vector.shape_cast %20 : vector<1x1x128xf32> to vector<1x128xf32>
    %22 = vector.broadcast %21 : vector<1x128xf32> to vector<8x128xf32>
    %23 = arith.addf %19, %22 : vector<8x128xf32>
    %24 = arith.addf %23, %5 : vector<8x128xf32>
    %25 = arith.truncf %24 : vector<8x128xf32> to vector<8x128xbf16>
    %c1 = arith.constant 1 : index
    %c0_20 = arith.constant 0 : index
    %c0_21 = arith.constant 0 : index
    %26 = vector.load %arg4[%c1, %c0_20, %c0_21] : memref<2x128x128xbf16, #tpu.memory_space<vmem>>, vector<1x128x128xbf16>
    %27 = vector.shape_cast %26 : vector<1x128x128xbf16> to vector<128x128xbf16>
    %cst_22 = arith.constant dense<0.000000e+00> : vector<8x128xf32>
    %28 = tpu.matmul %25, %27, %cst_22 {dimension_numbers = #tpu.dot_dimension_numbers<[1], [0], [0], [1], [0, 0, 1, 1], [], []>} : vector<8x128xbf16>, vector<128x128xbf16>, vector<8x128xf32> -> vector<8x128xf32>
    %c1_23 = arith.constant 1 : index
    %c0_24 = arith.constant 0 : index
    %c0_25 = arith.constant 0 : index
    %29 = vector.load %arg5[%c1_23, %c0_24, %c0_25] : memref<2x1x128xf32, #tpu.memory_space<vmem>>, vector<1x1x128xf32>
    %30 = vector.shape_cast %29 : vector<1x1x128xf32> to vector<1x128xf32>
    %31 = vector.broadcast %30 : vector<1x128xf32> to vector<8x128xf32>
    %32 = arith.addf %28, %31 : vector<8x128xf32>
    %cst_26 = arith.constant 0.000000e+00 : f32
    %33 = vector.broadcast %cst_26 : f32 to vector<8x128xf32>
    %34 = arith.maximumf %32, %33 : vector<8x128xf32>
    %35 = arith.truncf %34 : vector<8x128xf32> to vector<8x128xbf16>
    %c1_27 = arith.constant 1 : index
    %c0_28 = arith.constant 0 : index
    %c0_29 = arith.constant 0 : index
    %36 = vector.load %arg6[%c1_27, %c0_28, %c0_29] : memref<2x128x128xbf16, #tpu.memory_space<vmem>>, vector<1x128x128xbf16>
    %37 = vector.shape_cast %36 : vector<1x128x128xbf16> to vector<128x128xbf16>
    %cst_30 = arith.constant dense<0.000000e+00> : vector<8x128xf32>
    %38 = tpu.matmul %35, %37, %cst_30 {dimension_numbers = #tpu.dot_dimension_numbers<[1], [0], [0], [1], [0, 0, 1, 1], [], []>} : vector<8x128xbf16>, vector<128x128xbf16>, vector<8x128xf32> -> vector<8x128xf32>
    %c1_31 = arith.constant 1 : index
    %c0_32 = arith.constant 0 : index
    %c0_33 = arith.constant 0 : index
    %39 = vector.load %arg7[%c1_31, %c0_32, %c0_33] : memref<2x1x128xf32, #tpu.memory_space<vmem>>, vector<1x1x128xf32>
    %40 = vector.shape_cast %39 : vector<1x1x128xf32> to vector<1x128xf32>
    %41 = vector.broadcast %40 : vector<1x128xf32> to vector<8x128xf32>
    %42 = arith.addf %38, %41 : vector<8x128xf32>
    %43 = arith.addf %42, %24 : vector<8x128xf32>
    %c0_34 = arith.constant 0 : index
    %c0_35 = arith.constant 0 : index
    %44 = vector.load %arg8[%c0_34, %c0_35] : memref<1x128xf32, #tpu.memory_space<vmem>>, vector<1x128xf32>
    %45 = vector.broadcast %44 : vector<1x128xf32> to vector<8x128xf32>
    %46 = arith.mulf %43, %45 : vector<8x128xf32>
    %c0_36 = arith.constant 0 : index
    %c0_37 = arith.constant 0 : index
    %47 = vector.load %arg9[%c0_36, %c0_37] : memref<1x128xf32, #tpu.memory_space<vmem>>, vector<1x128xf32>
    %48 = vector.broadcast %47 : vector<1x128xf32> to vector<8x128xf32>
    %49 = arith.addf %46, %48 : vector<8x128xf32>
    %cst_38 = arith.constant 0.000000e+00 : f32
    %50 = vector.broadcast %cst_38 : f32 to vector<8x128xf32>
    %51 = arith.maximumf %49, %50 : vector<8x128xf32>
    %52 = arith.truncf %51 : vector<8x128xf32> to vector<8x128xbf16>
    %c0_39 = arith.constant 0 : index
    %c0_40 = arith.constant 0 : index
    %53 = vector.load %arg10[%c0_39, %c0_40] : memref<128x128xbf16, #tpu.memory_space<vmem>>, vector<128x128xbf16>
    %cst_41 = arith.constant dense<0.000000e+00> : vector<8x128xf32>
    %54 = tpu.matmul %52, %53, %cst_41 {dimension_numbers = #tpu.dot_dimension_numbers<[1], [0], [0], [1], [0, 0, 1, 1], [], []>} : vector<8x128xbf16>, vector<128x128xbf16>, vector<8x128xf32> -> vector<8x128xf32>
    %c0_42 = arith.constant 0 : index
    %c0_43 = arith.constant 0 : index
    %55 = vector.load %arg11[%c0_42, %c0_43] : memref<1x128xf32, #tpu.memory_space<vmem>>, vector<1x128xf32>
    %56 = vector.broadcast %55 : vector<1x128xf32> to vector<8x128xf32>
    %57 = arith.addf %54, %56 : vector<8x128xf32>
    %c0_44 = arith.constant 0 : index
    %c0_45 = arith.constant 0 : index
    %58 = vector.load %arg12[%c0_44, %c0_45] : memref<8x128xf32, #tpu.memory_space<vmem>>, vector<8x128xf32>
    tpu.vector_store %arg12[%c0_44, %c0_45], %57 {strides = array<i32>} : memref<8x128xf32, #tpu.memory_space<vmem>>, vector<8x128xf32>,
    return
  }
  func.func @transform_0(%arg0: i32) -> (i32, i32) {
    %c0_i32 = arith.constant 0 : i32
    %c0_i32_0 = arith.constant 0 : i32
    return %arg0, %c0_i32 : i32, i32
  }
  func.func @transform_1(%arg0: i32) -> (i32, i32) {
    %c0_i32 = arith.constant 0 : i32
    %c0_i32_0 = arith.constant 0 : i32
    %c0_i32_1 = arith.constant 0 : i32
    return %c0_i32, %c0_i32_0 : i32, i32
  }
  func.func @transform_2(%arg0: i32) -> (i32, i32) {
    %c0_i32 = arith.constant 0 : i32
    %c0_i32_0 = arith.constant 0 : i32
    %c0_i32_1 = arith.constant 0 : i32
    return %c0_i32, %c0_i32_0 : i32, i32
  }
  func.func @transform_3(%arg0: i32) -> (i32, i32, i32) {
    %c0_i32 = arith.constant 0 : i32
    %c0_i32_0 = arith.constant 0 : i32
    %c0_i32_1 = arith.constant 0 : i32
    %c0_i32_2 = arith.constant 0 : i32
    return %c0_i32, %c0_i32_0, %c0_i32_1 : i32, i32, i32
  }
  func.func @transform_4(%arg0: i32) -> (i32, i32, i32) {
    %c0_i32 = arith.constant 0 : i32
    %c0_i32_0 = arith.constant 0 : i32
    %c0_i32_1 = arith.constant 0 : i32
    %c0_i32_2 = arith.constant 0 : i32
    return %c0_i32, %c0_i32_0, %c0_i32_1 : i32, i32, i32
  }
  func.func @transform_5(%arg0: i32) -> (i32, i32, i32) {
    %c0_i32 = arith.constant 0 : i32
    %c0_i32_0 = arith.constant 0 : i32
    %c0_i32_1 = arith.constant 0 : i32
    %c0_i32_2 = arith.constant 0 : i32
    return %c0_i32, %c0_i32_0, %c0_i32_1 : i32, i32, i32
  }
  func.func @transform_6(%arg0: i32) -> (i32, i32, i32) {
    %c0_i32 = arith.constant 0 : i32
    %c0_i32_0 = arith.constant 0 : i32
    %c0_i32_1 = arith.constant 0 : i32
    %c0_i32_2 = arith.constant 0 : i32
    return %c0_i32, %c0_i32_0, %c0_i32_1 : i32, i32, i32
  }
  func.func @transform_7(%arg0: i32) -> (i32, i32) {
    %c0_i32 = arith.constant 0 : i32
    %c0_i32_0 = arith.constant 0 : i32
    %c0_i32_1 = arith.constant 0 : i32
    return %c0_i32, %c0_i32_0 : i32, i32
  }
  func.func @transform_8(%arg0: i32) -> (i32, i32) {
    %c0_i32 = arith.constant 0 : i32
    %c0_i32_0 = arith.constant 0 : i32
    %c0_i32_1 = arith.constant 0 : i32
    return %c0_i32, %c0_i32_0 : i32, i32
  }
  func.func @transform_9(%arg0: i32) -> (i32, i32) {
    %c0_i32 = arith.constant 0 : i32
    %c0_i32_0 = arith.constant 0 : i32
    %c0_i32_1 = arith.constant 0 : i32
    return %c0_i32, %c0_i32_0 : i32, i32
  }
  func.func @transform_10(%arg0: i32) -> (i32, i32) {
    %c0_i32 = arith.constant 0 : i32
    %c0_i32_0 = arith.constant 0 : i32
    %c0_i32_1 = arith.constant 0 : i32
    return %c0_i32, %c0_i32_0 : i32, i32
  }
  func.func @transform_11(%arg0: i32) -> (i32, i32) {
    %c0_i32 = arith.constant 0 : i32
    %c0_i32_0 = arith.constant 0 : i32
    return %arg0, %c0_i32 : i32, i32
  }
}

</mosaic_0001>

<llo_original>
// kernel: resnet_like_forward.1
$region0: #{resnet_like_forward.1}
  #allocation0 [shape = 'u32[]', space=smem, size = 0x4, offset = 0x4, fixed_abs, tag = 'smem constant byte address 0x4 - core index']
  #allocation1 [shape = 'u32[144,128]{1,0:T(1,128)}', space=vmem, size = 0x12000, scoped, tag = 'internal scratch']
  %s0 = inlined_call_operand.vmem [shape: bf16[8,128], index: 0, kind: input, shape index: {}]
  %s1 = inlined_call_operand.vmem [shape: bf16[128,128], index: 1, kind: input, shape index: {}]
  %s2 = inlined_call_operand.vmem [shape: f32[1,128], index: 2, kind: input, shape index: {}]
  %s3 = inlined_call_operand.vmem [shape: bf16[2,128,128], index: 3, kind: input, shape index: {}]
  %s4 = inlined_call_operand.vmem [shape: f32[2,1,128], index: 4, kind: input, shape index: {}]
  %s5 = inlined_call_operand.hbm [shape: bf16[2,128,128], index: 5, kind: input, shape index: {}]
  %s6 = inlined_call_operand.vmem [shape: f32[2,1,128], index: 6, kind: input, shape index: {}]
  %s7 = inlined_call_operand.vmem [shape: f32[1,128], index: 7, kind: input, shape index: {}]
  %s8 = inlined_call_operand.vmem [shape: f32[1,128], index: 8, kind: input, shape index: {}]
  %s9 = inlined_call_operand.hbm [shape: bf16[128,128], index: 9, kind: input, shape index: {}]
  %s10 = inlined_call_operand.vmem [shape: f32[1,128], index: 10, kind: input, shape index: {}]
  %s11 = inlined_call_operand.vmem [shape: f32[8,128], index: 11, kind: output, shape index: {}]
  %s12 = sld [smem:[#allocation0]]
  $region62: #{resnet_like_forward.1} parent=0
    _
  %s14 = ssub.s32 1, %s12
  %s15 = scalar_select 0, %s14, %s12
  $region1: #{resnet_like_forward.1} parent=0
    #allocation2 [shape = 'u8[65536]{0}', space=vmem, size = 0x10000, scoped, tag = 'input window, operand 5, single buffered']
    #allocation3 [shape = 's32[1]{0}', space=sflag, size = 0x4, scoped, tag = 'scoped memory for resnet_like_forward.1']
    #allocation4 [shape = 'u8[32768]{0}', space=vmem, size = 0x8000, scoped, tag = 'input window, operand 9, single buffered']
    #allocation5 [shape = 's32[1]{0}', space=sflag, size = 0x4, scoped, tag = 'scoped memory for resnet_like_forward.1']
    %16 = vsyncpa [#allocation3], 0
    %17 = vsyncpa [#allocation5], 0
    // Predicated region
    $region2: #{resnet_like_forward.1} parent=1 // pred_check
      _
    $region3: #{resnet_like_forward.1} parent=1 // pred_check_branch
      %19 = sbr.rel (0) target = $region5
    $region4: #{resnet_like_forward.1} parent=1 // pred_region
      _
    $region5: #{resnet_like_forward.1} parent=1 // pred_fallthru
      _
    // Predicated region
    $region6: #{resnet_like_forward.1} parent=1 // pred_check
      _
    $region7: #{resnet_like_forward.1} parent=1 // pred_check_branch
      %21 = sbr.rel (0) target = $region9
    $region8: #{resnet_like_forward.1} parent=1 // pred_region
      _
    $region9: #{resnet_like_forward.1} parent=1 // pred_fallthru
      _
    // Predicated region
    $region10: #{resnet_like_forward.1} parent=1 // pred_check
      _
    $region11: #{resnet_like_forward.1} parent=1 // pred_check_branch
      %23 = sbr.rel (0) target = $region13
    $region12: #{resnet_like_forward.1} parent=1 // pred_region
      _
    $region13: #{resnet_like_forward.1} parent=1 // pred_fallthru
      _
    // Predicated region
    $region14: #{resnet_like_forward.1} parent=1 // pred_check
      _
    $region15: #{resnet_like_forward.1} parent=1 // pred_check_branch
      %25 = sbr.rel (0) target = $region17
    $region16: #{resnet_like_forward.1} parent=1 // pred_region
      _
    $region17: #{resnet_like_forward.1} parent=1 // pred_fallthru
      _
    // Predicated region
    $region18: #{resnet_like_forward.1} parent=1 // pred_check
      _
    $region19: #{resnet_like_forward.1} parent=1 // pred_check_branch
      %27 = sbr.rel (0) target = $region21
    $region20: #{resnet_like_forward.1} parent=1 // pred_region
      _
    $region21: #{resnet_like_forward.1} parent=1 // pred_fallthru
      _
    // Predicated region
    $region22: #{resnet_like_forward.1} parent=1 // pred_check
      _
    $region23: #{resnet_like_forward.1} parent=1 // pred_check_branch
      %29 = sbr.rel (0) target = $region25
    $region24: #{resnet_like_forward.1} parent=1 // pred_region
      %s31 = ssub.s32 2048, 2048
      %32 = vsyncadd [#allocation3], %s31
      %s33 = sshll.u32 [#allocation2], 4
      %s34 = int_to_ptr.vmem [resolvable:$true] %s33
      %39 = dma.hbm_to_vmem [thread:$0]  %s5, 2048, %s34, [#allocation3], 64, 64, 4
    $region25: #{resnet_like_forward.1} parent=1 // pred_fallthru
      _
    // Predicated region
    $region26: #{resnet_like_forward.1} parent=1 // pred_check
      _
    $region27: #{resnet_like_forward.1} parent=1 // pred_check_branch
      %41 = sbr.rel (0) target = $region29
    $region28: #{resnet_like_forward.1} parent=1 // pred_region
      _
    $region29: #{resnet_like_forward.1} parent=1 // pred_fallthru
      _
    // Predicated region
    $region30: #{resnet_like_forward.1} parent=1 // pred_check
      _
    $region31: #{resnet_like_forward.1} parent=1 // pred_check_branch
      %43 = sbr.rel (0) target = $region33
    $region32: #{resnet_like_forward.1} parent=1 // pred_region
      _
    $region33: #{resnet_like_forward.1} parent=1 // pred_fallthru
      _
    // Predicated region
    $region34: #{resnet_like_forward.1} parent=1 // pred_check
      _
    $region35: #{resnet_like_forward.1} parent=1 // pred_check_branch
      %45 = sbr.rel (0) target = $region37
    $region36: #{resnet_like_forward.1} parent=1 // pred_region
      _
    $region37: #{resnet_like_forward.1} parent=1 // pred_fallthru
      _
    // Predicated region
    $region38: #{resnet_like_forward.1} parent=1 // pred_check
      _
    $region39: #{resnet_like_forward.1} parent=1 // pred_check_branch
      %47 = sbr.rel (0) target = $region41
    $region40: #{resnet_like_forward.1} parent=1 // pred_region
      %s49 = ssub.s32 1024, 1024
      %50 = vsyncadd [#allocation5], %s49
      %s51 = sshll.u32 [#allocation4], 4
      %s52 = int_to_ptr.vmem [resolvable:$true] %s51
      %57 = dma.hbm_to_vmem [thread:$0]  %s9, 1024, %s52, [#allocation5], 64, 64, 4
    $region41: #{resnet_like_forward.1} parent=1 // pred_fallthru
      _
    // Predicated region
    $region42: #{resnet_like_forward.1} parent=1 // pred_check
      _
    $region43: #{resnet_like_forward.1} parent=1 // pred_check_branch
      %59 = sbr.rel (0) target = $region45
    $region44: #{resnet_like_forward.1} parent=1 // pred_region
      _
    $region45: #{resnet_like_forward.1} parent=1 // pred_fallthru
      _
    // Predicated region
    $region46: #{resnet_like_forward.1} parent=1 // pred_check
      _
    $region47: #{resnet_like_forward.1} parent=1 // pred_check_branch
      %61 = sbr.rel (0) target = $region49
    $region48: #{resnet_like_forward.1} parent=1 // pred_region
      %62 = dma.done [#allocation3], 2048
    $region49: #{resnet_like_forward.1} parent=1 // pred_fallthru
      _
    // Predicated region
    $region50: #{resnet_like_forward.1} parent=1 // pred_check
      _
    $region51: #{resnet_like_forward.1} parent=1 // pred_check_branch
      %64 = sbr.rel (0) target = $region53
    $region52: #{resnet_like_forward.1} parent=1 // pred_region
      %65 = dma.done [#allocation5], 1024
    $region53: #{resnet_like_forward.1} parent=1 // pred_fallthru
      _
    %v67 = vld [vmem:[%s0] sm:$0xf]
    %v68 = vld [vmem:[%s1] sm:$0xf]
    %v69 = vld [vmem:[%s1 + $0x4] sm:$0xf]
    %v70 = vld [vmem:[%s1 + $0x8] sm:$0xf]
    %v71 = vld [vmem:[%s1 + $0xc] sm:$0xf]
    %v72 = vld [vmem:[%s1 + $0x10] sm:$0xf]
    %v73 = vld [vmem:[%s1 + $0x14] sm:$0xf]
    %v74 = vld [vmem:[%s1 + $0x18] sm:$0xf]
    %v75 = vld [vmem:[%s1 + $0x1c] sm:$0xf]
    %v76 = vld [vmem:[%s1 + $0x20] sm:$0xf]
    %v77 = vld [vmem:[%s1 + $0x24] sm:$0xf]
    %v78 = vld [vmem:[%s1 + $0x28] sm:$0xf]
    %v79 = vld [vmem:[%s1 + $0x2c] sm:$0xf]
    %v80 = vld [vmem:[%s1 + $0x30] sm:$0xf]
    %v81 = vld [vmem:[%s1 + $0x34] sm:$0xf]
    %v82 = vld [vmem:[%s1 + $0x38] sm:$0xf]
    %v83 = vld [vmem:[%s1 + $0x3c] sm:$0xf]
    %v84 = vld [vmem:[%s2] sm:$0x1]
    %v86 = vlaneseq
    %v87 = vshrl.u32 %v86, 7
    %v88 = vsub.s32 0, %v87
    %v89 = vrot.slane %v84, %v88
    %v107 = vunpack.c.l.b16 %v68
    %v108 = vunpack.c.l.b16 %v69
    %v109 = vunpack.c.l.b16 %v70
    %v110 = vunpack.c.l.b16 %v71
    %v111 = vunpack.c.l.b16 %v72
    %v112 = vunpack.c.l.b16 %v73
    %v113 = vunpack.c.l.b16 %v74
    %v114 = vunpack.c.l.b16 %v75
    %v115 = vunpack.c.l.b16 %v76
    %v116 = vunpack.c.l.b16 %v77
    %v117 = vunpack.c.l.b16 %v78
    %v118 = vunpack.c.l.b16 %v79
    %v119 = vunpack.c.l.b16 %v80
    %v120 = vunpack.c.l.b16 %v81
    %v121 = vunpack.c.l.b16 %v82
    %v122 = vunpack.c.l.b16 %v83
    %v123 = vpack.c.b16 %v108, %v107
    %v124 = vpack.c.b16 %v110, %v109
    %v125 = vpack.c.b16 %v112, %v111
    %v126 = vpack.c.b16 %v114, %v113
    %v127 = vpack.c.b16 %v116, %v115
    %v128 = vpack.c.b16 %v118, %v117
    %v129 = vpack.c.b16 %v120, %v119
    %v130 = vpack.c.b16 %v122, %v121
    %139 = vmatprep.subr.bf16.mxu0 0
    %140 = vmatpush1.bf16.msra.mxu0 %v130
    %141 = vmatprep.subr.bf16.mxu0 0
    %142 = vmatpush1.bf16.msra.mxu0 %v129
    %143 = vmatprep.subr.bf16.mxu0 0
    %144 = vmatpush1.bf16.msra.mxu0 %v128
    %145 = vmatprep.subr.bf16.mxu0 0
    %146 = vmatpush1.bf16.msra.mxu0 %v127
    %147 = vmatprep.subr.bf16.mxu0 0
    %148 = vmatpush1.bf16.msra.mxu0 %v126
    %149 = vmatprep.subr.bf16.mxu0 0
    %150 = vmatpush1.bf16.msra.mxu0 %v125
    %151 = vmatprep.subr.bf16.mxu0 0
    %152 = vmatpush1.bf16.msra.mxu0 %v124
    %153 = vmatprep.subr.bf16.mxu0 0
    %154 = vmatpush1.bf16.msra.mxu0 %v123
    %155 = vmatprep.subr.bf16.mxu0 0
    %156 = vmatpush2.bf16.msra.mxu0 0
    %157 = vmatprep.subr.bf16.mxu0 0
    %158 = vmatpush2.bf16.msra.mxu0 0
    %159 = vmatprep.subr.bf16.mxu0 0
    %160 = vmatpush2.bf16.msra.mxu0 0
    %161 = vmatprep.subr.bf16.mxu0 0
    %162 = vmatpush2.bf16.msra.mxu0 0
    %163 = vmatprep.subr.bf16.mxu0 0
    %164 = vmatpush2.bf16.msra.mxu0 0
    %165 = vmatprep.subr.bf16.mxu0 0
    %166 = vmatpush2.bf16.msra.mxu0 0
    %167 = vmatprep.subr.bf16.mxu0 0
    %168 = vmatpush2.bf16.msra.mxu0 0
    %169 = vmatprep.subr.bf16.mxu0 0
    %170 = vmatpush2.bf16.msra.mxu0 0
    %171 = vmatprep.mubr.bf16.mxu0 0
    %172 = vmatmul.mubr.bf16.gmra.mxu0 %v67
    %v173 = vpop.f32.mrf.mxu0
    %v174 = vadd.f32 %v89, %v173
    %v175 = vpop.f32.mrf.mxu0
    %v176 = vpop.f32.mrf.mxu0
    %v177 = vpop.f32.mrf.mxu0
    %178 = vdwg.mxu0
    %v179 = vpack.c.bf16 %v174, %v174
    %v180 = vld [vmem:[%s3] sm:$0xf]
    %v181 = vld [vmem:[%s3 + $0x4] sm:$0xf]
    %v182 = vld [vmem:[%s3 + $0x8] sm:$0xf]
    %v183 = vld [vmem:[%s3 + $0xc] sm:$0xf]
    %v184 = vld [vmem:[%s3 + $0x10] sm:$0xf]
    %v185 = vld [vmem:[%s3 + $0x14] sm:$0xf]
    %v186 = vld [vmem:[%s3 + $0x18] sm:$0xf]
    %v187 = vld [vmem:[%s3 + $0x1c] sm:$0xf]
    %v188 = vld [vmem:[%s3 + $0x20] sm:$0xf]
    %v189 = vld [vmem:[%s3 + $0x24] sm:$0xf]
    %v190 = vld [vmem:[%s3 + $0x28] sm:$0xf]
    %v191 = vld [vmem:[%s3 + $0x2c] sm:$0xf]
    %v192 = vld [vmem:[%s3 + $0x30] sm:$0xf]
    %v193 = vld [vmem:[%s3 + $0x34] sm:$0xf]
    %v194 = vld [vmem:[%s3 + $0x38] sm:$0xf]
    %v195 = vld [vmem:[%s3 + $0x3c] sm:$0xf]
    %v196 = vld [vmem:[%s4] sm:$0x1]
    %v198 = vlaneseq
    %v199 = vshrl.u32 %v198, 7
    %v200 = vsub.s32 0, %v199
    %v201 = vrot.slane %v196, %v200
    %v219 = vunpack.c.l.b16 %v180
    %v220 = vunpack.c.l.b16 %v181
    %v221 = vunpack.c.l.b16 %v182
    %v222 = vunpack.c.l.b16 %v183
    %v223 = vunpack.c.l.b16 %v184
    %v224 = vunpack.c.l.b16 %v185
    %v225 = vunpack.c.l.b16 %v186
    %v226 = vunpack.c.l.b16 %v187
    %v227 = vunpack.c.l.b16 %v188
    %v228 = vunpack.c.l.b16 %v189
    %v229 = vunpack.c.l.b16 %v190
    %v230 = vunpack.c.l.b16 %v191
    %v231 = vunpack.c.l.b16 %v192
    %v232 = vunpack.c.l.b16 %v193
    %v233 = vunpack.c.l.b16 %v194
    %v234 = vunpack.c.l.b16 %v195
    %v235 = vpack.c.b16 %v220, %v219
    %v236 = vpack.c.b16 %v222, %v221
    %v237 = vpack.c.b16 %v224, %v223
    %v238 = vpack.c.b16 %v226, %v225
    %v239 = vpack.c.b16 %v228, %v227
    %v240 = vpack.c.b16 %v230, %v229
    %v241 = vpack.c.b16 %v232, %v231
    %v242 = vpack.c.b16 %v234, %v233
    %251 = vmatprep.subr.bf16.mxu0 0
    %252 = vmatpush1.bf16.msra.mxu0 %v242
    %253 = vmatprep.subr.bf16.mxu0 0
    %254 = vmatpush1.bf16.msra.mxu0 %v241
    %255 = vmatprep.subr.bf16.mxu0 0
    %256 = vmatpush1.bf16.msra.mxu0 %v240
    %257 = vmatprep.subr.bf16.mxu0 0
    %258 = vmatpush1.bf16.msra.mxu0 %v239
    %259 = vmatprep.subr.bf16.mxu0 0
    %260 = vmatpush1.bf16.msra.mxu0 %v238
    %261 = vmatprep.subr.bf16.mxu0 0
    %262 = vmatpush1.bf16.msra.mxu0 %v237
    %263 = vmatprep.subr.bf16.mxu0 0
    %264 = vmatpush1.bf16.msra.mxu0 %v236
    %265 = vmatprep.subr.bf16.mxu0 0
    %266 = vmatpush1.bf16.msra.mxu0 %v235
    %267 = vmatprep.subr.bf16.mxu0 0
    %268 = vmatpush2.bf16.msra.mxu0 0
    %269 = vmatprep.subr.bf16.mxu0 0
    %270 = vmatpush2.bf16.msra.mxu0 0
    %271 = vmatprep.subr.bf16.mxu0 0
    %272 = vmatpush2.bf16.msra.mxu0 0
    %273 = vmatprep.subr.bf16.mxu0 0
    %274 = vmatpush2.bf16.msra.mxu0 0
    %275 = vmatprep.subr.bf16.mxu0 0
    %276 = vmatpush2.bf16.msra.mxu0 0
    %277 = vmatprep.subr.bf16.mxu0 0
    %278 = vmatpush2.bf16.msra.mxu0 0
    %279 = vmatprep.subr.bf16.mxu0 0
    %280 = vmatpush2.bf16.msra.mxu0 0
    %281 = vmatprep.subr.bf16.mxu0 0
    %282 = vmatpush2.bf16.msra.mxu0 0
    %283 = vmatprep.mubr.bf16.mxu0 0
    %284 = vmatmul.mubr.bf16.gmra.mxu0 %v179
    %v285 = vpop.f32.mrf.mxu0
    %v286 = vadd.f32 %v201, %v285
    %v287 = vpop.f32.mrf.mxu0
    %v288 = vpop.f32.mrf.mxu0
    %v289 = vpop.f32.mrf.mxu0
    %290 = vdwg.mxu0
    %v291 = vmax.f32 %v286, 0.0
    %v292 = vpack.c.bf16 %v291, %v291
    %v293 = vld [vmem:[#allocation2] sm:$0xf]
    %v294 = vld [vmem:[#allocation2 + $0x4] sm:$0xf]
    %v295 = vld [vmem:[#allocation2 + $0x8] sm:$0xf]
    %v296 = vld [vmem:[#allocation2 + $0xc] sm:$0xf]
    %v297 = vld [vmem:[#allocation2 + $0x10] sm:$0xf]
    %v298 = vld [vmem:[#allocation2 + $0x14] sm:$0xf]
    %v299 = vld [vmem:[#allocation2 + $0x18] sm:$0xf]
    %v300 = vld [vmem:[#allocation2 + $0x1c] sm:$0xf]
    %v301 = vld [vmem:[#allocation2 + $0x20] sm:$0xf]
    %v302 = vld [vmem:[#allocation2 + $0x24] sm:$0xf]
    %v303 = vld [vmem:[#allocation2 + $0x28] sm:$0xf]
    %v304 = vld [vmem:[#allocation2 + $0x2c] sm:$0xf]
    %v305 = vld [vmem:[#allocation2 + $0x30] sm:$0xf]
    %v306 = vld [vmem:[#allocation2 + $0x34] sm:$0xf]
    %v307 = vld [vmem:[#allocation2 + $0x38] sm:$0xf]
    %v308 = vld [vmem:[#allocation2 + $0x3c] sm:$0xf]
    %v309 = vld [vmem:[%s6] sm:$0x1]
    %v311 = vlaneseq
    %v312 = vshrl.u32 %v311, 7
    %v313 = vsub.s32 0, %v312
    %v314 = vrot.slane %v309, %v313
    %v332 = vunpack.c.l.b16 %v293
    %v333 = vunpack.c.l.b16 %v294
    %v334 = vunpack.c.l.b16 %v295
    %v335 = vunpack.c.l.b16 %v296
    %v336 = vunpack.c.l.b16 %v297
    %v337 = vunpack.c.l.b16 %v298
    %v338 = vunpack.c.l.b16 %v299
    %v339 = vunpack.c.l.b16 %v300
    %v340 = vunpack.c.l.b16 %v301
    %v341 = vunpack.c.l.b16 %v302
    %v342 = vunpack.c.l.b16 %v303
    %v343 = vunpack.c.l.b16 %v304
    %v344 = vunpack.c.l.b16 %v305
    %v345 = vunpack.c.l.b16 %v306
    %v346 = vunpack.c.l.b16 %v307
    %v347 = vunpack.c.l.b16 %v308
    %v348 = vpack.c.b16 %v333, %v332
    %v349 = vpack.c.b16 %v335, %v334
    %v350 = vpack.c.b16 %v337, %v336
    %v351 = vpack.c.b16 %v339, %v338
    %v352 = vpack.c.b16 %v341, %v340
    %v353 = vpack.c.b16 %v343, %v342
    %v354 = vpack.c.b16 %v345, %v344
    %v355 = vpack.c.b16 %v347, %v346
    %364 = vmatprep.subr.bf16.mxu0 0
    %365 = vmatpush1.bf16.msra.mxu0 %v355
    %366 = vmatprep.subr.bf16.mxu0 0
    %367 = vmatpush1.bf16.msra.mxu0 %v354
    %368 = vmatprep.subr.bf16.mxu0 0
    %369 = vmatpush1.bf16.msra.mxu0 %v353
    %370 = vmatprep.subr.bf16.mxu0 0
    %371 = vmatpush1.bf16.msra.mxu0 %v352
    %372 = vmatprep.subr.bf16.mxu0 0
    %373 = vmatpush1.bf16.msra.mxu0 %v351
    %374 = vmatprep.subr.bf16.mxu0 0
    %375 = vmatpush1.bf16.msra.mxu0 %v350
    %376 = vmatprep.subr.bf16.mxu0 0
    %377 = vmatpush1.bf16.msra.mxu0 %v349
    %378 = vmatprep.subr.bf16.mxu0 0
    %379 = vmatpush1.bf16.msra.mxu0 %v348
    %380 = vmatprep.subr.bf16.mxu0 0
    %381 = vmatpush2.bf16.msra.mxu0 0
    %382 = vmatprep.subr.bf16.mxu0 0
    %383 = vmatpush2.bf16.msra.mxu0 0
    %384 = vmatprep.subr.bf16.mxu0 0
    %385 = vmatpush2.bf16.msra.mxu0 0
    %386 = vmatprep.subr.bf16.mxu0 0
    %387 = vmatpush2.bf16.msra.mxu0 0
    %388 = vmatprep.subr.bf16.mxu0 0
    %389 = vmatpush2.bf16.msra.mxu0 0
    %390 = vmatprep.subr.bf16.mxu0 0
    %391 = vmatpush2.bf16.msra.mxu0 0
    %392 = vmatprep.subr.bf16.mxu0 0
    %393 = vmatpush2.bf16.msra.mxu0 0
    %394 = vmatprep.subr.bf16.mxu0 0
    %395 = vmatpush2.bf16.msra.mxu0 0
    %396 = vmatprep.mubr.bf16.mxu0 0
    %397 = vmatmul.mubr.bf16.gmra.mxu0 %v292
    %v398 = vpop.f32.mrf.mxu0
    %v399 = vadd.f32 %v314, %v398
    %v400 = vpop.f32.mrf.mxu0
    %v401 = vpop.f32.mrf.mxu0
    %v402 = vpop.f32.mrf.mxu0
    %403 = vdwg.mxu0
    %v404 = vadd.f32 %v399, %v174
    %v405 = vpack.c.bf16 %v404, %v404
    %s406 = scalar_lea.vmem %s3, 64
    %v407 = vld [vmem:[%s406] sm:$0xf]
    %v408 = vld [vmem:[%s406 + $0x4] sm:$0xf]
    %v409 = vld [vmem:[%s406 + $0x8] sm:$0xf]
    %v410 = vld [vmem:[%s406 + $0xc] sm:$0xf]
    %v411 = vld [vmem:[%s406 + $0x10] sm:$0xf]
    %v412 = vld [vmem:[%s406 + $0x14] sm:$0xf]
    %v413 = vld [vmem:[%s406 + $0x18] sm:$0xf]
    %v414 = vld [vmem:[%s406 + $0x1c] sm:$0xf]
    %v415 = vld [vmem:[%s406 + $0x20] sm:$0xf]
    %v416 = vld [vmem:[%s406 + $0x24] sm:$0xf]
    %v417 = vld [vmem:[%s406 + $0x28] sm:$0xf]
    %v418 = vld [vmem:[%s406 + $0x2c] sm:$0xf]
    %v419 = vld [vmem:[%s406 + $0x30] sm:$0xf]
    %v420 = vld [vmem:[%s406 + $0x34] sm:$0xf]
    %v421 = vld [vmem:[%s406 + $0x38] sm:$0xf]
    %v422 = vld [vmem:[%s406 + $0x3c] sm:$0xf]
    %s423 = scalar_lea.vmem %s4, 1
    %v424 = vld [vmem:[%s423] sm:$0x1]
    %v426 = vlaneseq
    %v427 = vshrl.u32 %v426, 7
    %v428 = vsub.s32 0, %v427
    %v429 = vrot.slane %v424, %v428
    %v447 = vunpack.c.l.b16 %v407
    %v448 = vunpack.c.l.b16 %v408
    %v449 = vunpack.c.l.b16 %v409
    %v450 = vunpack.c.l.b16 %v410
    %v451 = vunpack.c.l.b16 %v411
    %v452 = vunpack.c.l.b16 %v412
    %v453 = vunpack.c.l.b16 %v413
    %v454 = vunpack.c.l.b16 %v414
    %v455 = vunpack.c.l.b16 %v415
    %v456 = vunpack.c.l.b16 %v416
    %v457 = vunpack.c.l.b16 %v417
    %v458 = vunpack.c.l.b16 %v418
    %v459 = vunpack.c.l.b16 %v419
    %v460 = vunpack.c.l.b16 %v420
    %v461 = vunpack.c.l.b16 %v421
    %v462 = vunpack.c.l.b16 %v422
    %v463 = vpack.c.b16 %v448, %v447
    %v464 = vpack.c.b16 %v450, %v449
    %v465 = vpack.c.b16 %v452, %v451
    %v466 = vpack.c.b16 %v454, %v453
    %v467 = vpack.c.b16 %v456, %v455
    %v468 = vpack.c.b16 %v458, %v457
    %v469 = vpack.c.b16 %v460, %v459
    %v470 = vpack.c.b16 %v462, %v461
    %479 = vmatprep.subr.bf16.mxu0 0
    %480 = vmatpush1.bf16.msra.mxu0 %v470
    %481 = vmatprep.subr.bf16.mxu0 0
    %482 = vmatpush1.bf16.msra.mxu0 %v469
    %483 = vmatprep.subr.bf16.mxu0 0
    %484 = vmatpush1.bf16.msra.mxu0 %v468
    %485 = vmatprep.subr.bf16.mxu0 0
    %486 = vmatpush1.bf16.msra.mxu0 %v467
    %487 = vmatprep.subr.bf16.mxu0 0
    %488 = vmatpush1.bf16.msra.mxu0 %v466
    %489 = vmatprep.subr.bf16.mxu0 0
    %490 = vmatpush1.bf16.msra.mxu0 %v465
    %491 = vmatprep.subr.bf16.mxu0 0
    %492 = vmatpush1.bf16.msra.mxu0 %v464
    %493 = vmatprep.subr.bf16.mxu0 0
    %494 = vmatpush1.bf16.msra.mxu0 %v463
    %495 = vmatprep.subr.bf16.mxu0 0
    %496 = vmatpush2.bf16.msra.mxu0 0
    %497 = vmatprep.subr.bf16.mxu0 0
    %498 = vmatpush2.bf16.msra.mxu0 0
    %499 = vmatprep.subr.bf16.mxu0 0
    %500 = vmatpush2.bf16.msra.mxu0 0
    %501 = vmatprep.subr.bf16.mxu0 0
    %502 = vmatpush2.bf16.msra.mxu0 0
    %503 = vmatprep.subr.bf16.mxu0 0
    %504 = vmatpush2.bf16.msra.mxu0 0
    %505 = vmatprep.subr.bf16.mxu0 0
    %506 = vmatpush2.bf16.msra.mxu0 0
    %507 = vmatprep.subr.bf16.mxu0 0
    %508 = vmatpush2.bf16.msra.mxu0 0
    %509 = vmatprep.subr.bf16.mxu0 0
    %510 = vmatpush2.bf16.msra.mxu0 0
    %511 = vmatprep.mubr.bf16.mxu0 0
    %512 = vmatmul.mubr.bf16.gmra.mxu0 %v405
    %v513 = vpop.f32.mrf.mxu0
    %v514 = vadd.f32 %v429, %v513
    %v515 = vpop.f32.mrf.mxu0
    %v516 = vpop.f32.mrf.mxu0
    %v517 = vpop.f32.mrf.mxu0
    %518 = vdwg.mxu0
    %v519 = vmax.f32 %v514, 0.0
    %v520 = vpack.c.bf16 %v519, %v519
    %s521 = scalar_lea.vmem [#allocation2], 64
    %v522 = vld [vmem:[%s521] sm:$0xf]
    %v523 = vld [vmem:[%s521 + $0x4] sm:$0xf]
    %v524 = vld [vmem:[%s521 + $0x8] sm:$0xf]
    %v525 = vld [vmem:[%s521 + $0xc] sm:$0xf]
    %v526 = vld [vmem:[%s521 + $0x10] sm:$0xf]
    %v527 = vld [vmem:[%s521 + $0x14] sm:$0xf]
    %v528 = vld [vmem:[%s521 + $0x18] sm:$0xf]
    %v529 = vld [vmem:[%s521 + $0x1c] sm:$0xf]
    %v530 = vld [vmem:[%s521 + $0x20] sm:$0xf]
    %v531 = vld [vmem:[%s521 + $0x24] sm:$0xf]
    %v532 = vld [vmem:[%s521 + $0x28] sm:$0xf]
    %v533 = vld [vmem:[%s521 + $0x2c] sm:$0xf]
    %v534 = vld [vmem:[%s521 + $0x30] sm:$0xf]
    %v535 = vld [vmem:[%s521 + $0x34] sm:$0xf]
    %v536 = vld [vmem:[%s521 + $0x38] sm:$0xf]
    %v537 = vld [vmem:[%s521 + $0x3c] sm:$0xf]
    %s538 = scalar_lea.vmem %s6, 1
    %v539 = vld [vmem:[%s538] sm:$0x1]
    %v541 = vlaneseq
    %v542 = vshrl.u32 %v541, 7
    %v543 = vsub.s32 0, %v542
    %v544 = vrot.slane %v539, %v543
    %v562 = vunpack.c.l.b16 %v522
    %v563 = vunpack.c.l.b16 %v523
    %v564 = vunpack.c.l.b16 %v524
    %v565 = vunpack.c.l.b16 %v525
    %v566 = vunpack.c.l.b16 %v526
    %v567 = vunpack.c.l.b16 %v527
    %v568 = vunpack.c.l.b16 %v528
    %v569 = vunpack.c.l.b16 %v529
    %v570 = vunpack.c.l.b16 %v530
    %v571 = vunpack.c.l.b16 %v531
    %v572 = vunpack.c.l.b16 %v532
    %v573 = vunpack.c.l.b16 %v533
    %v574 = vunpack.c.l.b16 %v534
    %v575 = vunpack.c.l.b16 %v535
    %v576 = vunpack.c.l.b16 %v536
    %v577 = vunpack.c.l.b16 %v537
    %v578 = vpack.c.b16 %v563, %v562
    %v579 = vpack.c.b16 %v565, %v564
    %v580 = vpack.c.b16 %v567, %v566
    %v581 = vpack.c.b16 %v569, %v568
    %v582 = vpack.c.b16 %v571, %v570
    %v583 = vpack.c.b16 %v573, %v572
    %v584 = vpack.c.b16 %v575, %v574
    %v585 = vpack.c.b16 %v577, %v576
    %594 = vmatprep.subr.bf16.mxu0 0
    %595 = vmatpush1.bf16.msra.mxu0 %v585
    %596 = vmatprep.subr.bf16.mxu0 0
    %597 = vmatpush1.bf16.msra.mxu0 %v584
    %598 = vmatprep.subr.bf16.mxu0 0
    %599 = vmatpush1.bf16.msra.mxu0 %v583
    %600 = vmatprep.subr.bf16.mxu0 0
    %601 = vmatpush1.bf16.msra.mxu0 %v582
    %602 = vmatprep.subr.bf16.mxu0 0
    %603 = vmatpush1.bf16.msra.mxu0 %v581
    %604 = vmatprep.subr.bf16.mxu0 0
    %605 = vmatpush1.bf16.msra.mxu0 %v580
    %606 = vmatprep.subr.bf16.mxu0 0
    %607 = vmatpush1.bf16.msra.mxu0 %v579
    %608 = vmatprep.subr.bf16.mxu0 0
    %609 = vmatpush1.bf16.msra.mxu0 %v578
    %610 = vmatprep.subr.bf16.mxu0 0
    %611 = vmatpush2.bf16.msra.mxu0 0
    %612 = vmatprep.subr.bf16.mxu0 0
    %613 = vmatpush2.bf16.msra.mxu0 0
    %614 = vmatprep.subr.bf16.mxu0 0
    %615 = vmatpush2.bf16.msra.mxu0 0
    %616 = vmatprep.subr.bf16.mxu0 0
    %617 = vmatpush2.bf16.msra.mxu0 0
    %618 = vmatprep.subr.bf16.mxu0 0
    %619 = vmatpush2.bf16.msra.mxu0 0
    %620 = vmatprep.subr.bf16.mxu0 0
    %621 = vmatpush2.bf16.msra.mxu0 0
    %622 = vmatprep.subr.bf16.mxu0 0
    %623 = vmatpush2.bf16.msra.mxu0 0
    %624 = vmatprep.subr.bf16.mxu0 0
    %625 = vmatpush2.bf16.msra.mxu0 0
    %626 = vmatprep.mubr.bf16.mxu0 0
    %627 = vmatmul.mubr.bf16.gmra.mxu0 %v520
    %v628 = vpop.f32.mrf.mxu0
    %v629 = vadd.f32 %v544, %v628
    %v630 = vpop.f32.mrf.mxu0
    %v631 = vpop.f32.mrf.mxu0
    %v632 = vpop.f32.mrf.mxu0
    %633 = vdwg.mxu0
    %v634 = vadd.f32 %v629, %v404
    %v635 = vld [vmem:[%s7] sm:$0x1]
    %v637 = vlaneseq
    %v638 = vshrl.u32 %v637, 7
    %v639 = vsub.s32 0, %v638
    %v640 = vrot.slane %v635, %v639
    %v642 = vmul.f32 %v634, %v640
    %v643 = vld [vmem:[%s8] sm:$0x1]
    %v645 = vlaneseq
    %v646 = vshrl.u32 %v645, 7
    %v647 = vsub.s32 0, %v646
    %v648 = vrot.slane %v643, %v647
    %v650 = vadd.f32 %v642, %v648
    %v651 = vmax.f32 %v650, 0.0
    %v652 = vpack.c.bf16 %v651, %v651
    %v653 = vld [vmem:[#allocation4] sm:$0xf]
    %v654 = vld [vmem:[#allocation4 + $0x4] sm:$0xf]
    %v655 = vld [vmem:[#allocation4 + $0x8] sm:$0xf]
    %v656 = vld [vmem:[#allocation4 + $0xc] sm:$0xf]
    %v657 = vld [vmem:[#allocation4 + $0x10] sm:$0xf]
    %v658 = vld [vmem:[#allocation4 + $0x14] sm:$0xf]
    %v659 = vld [vmem:[#allocation4 + $0x18] sm:$0xf]
    %v660 = vld [vmem:[#allocation4 + $0x1c] sm:$0xf]
    %v661 = vld [vmem:[#allocation4 + $0x20] sm:$0xf]
    %v662 = vld [vmem:[#allocation4 + $0x24] sm:$0xf]
    %v663 = vld [vmem:[#allocation4 + $0x28] sm:$0xf]
    %v664 = vld [vmem:[#allocation4 + $0x2c] sm:$0xf]
    %v665 = vld [vmem:[#allocation4 + $0x30] sm:$0xf]
    %v666 = vld [vmem:[#allocation4 + $0x34] sm:$0xf]
    %v667 = vld [vmem:[#allocation4 + $0x38] sm:$0xf]
    %v668 = vld [vmem:[#allocation4 + $0x3c] sm:$0xf]
    %v669 = vld [vmem:[%s10] sm:$0x1]
    %v671 = vlaneseq
    %v672 = vshrl.u32 %v671, 7
    %v673 = vsub.s32 0, %v672
    %v674 = vrot.slane %v669, %v673
    %v692 = vunpack.c.l.b16 %v653
    %v693 = vunpack.c.l.b16 %v654
    %v694 = vunpack.c.l.b16 %v655
    %v695 = vunpack.c.l.b16 %v656
    %v696 = vunpack.c.l.b16 %v657
    %v697 = vunpack.c.l.b16 %v658
    %v698 = vunpack.c.l.b16 %v659
    %v699 = vunpack.c.l.b16 %v660
    %v700 = vunpack.c.l.b16 %v661
    %v701 = vunpack.c.l.b16 %v662
    %v702 = vunpack.c.l.b16 %v663
    %v703 = vunpack.c.l.b16 %v664
    %v704 = vunpack.c.l.b16 %v665
    %v705 = vunpack.c.l.b16 %v666
    %v706 = vunpack.c.l.b16 %v667
    %v707 = vunpack.c.l.b16 %v668
    %v708 = vpack.c.b16 %v693, %v692
    %v709 = vpack.c.b16 %v695, %v694
    %v710 = vpack.c.b16 %v697, %v696
    %v711 = vpack.c.b16 %v699, %v698
    %v712 = vpack.c.b16 %v701, %v700
    %v713 = vpack.c.b16 %v703, %v702
    %v714 = vpack.c.b16 %v705, %v704
    %v715 = vpack.c.b16 %v707, %v706
    %724 = vmatprep.subr.bf16.mxu0 0
    %725 = vmatpush1.bf16.msra.mxu0 %v715
    %726 = vmatprep.subr.bf16.mxu0 0
    %727 = vmatpush1.bf16.msra.mxu0 %v714
    %728 = vmatprep.subr.bf16.mxu0 0
    %729 = vmatpush1.bf16.msra.mxu0 %v713
    %730 = vmatprep.subr.bf16.mxu0 0
    %731 = vmatpush1.bf16.msra.mxu0 %v712
    %732 = vmatprep.subr.bf16.mxu0 0
    %733 = vmatpush1.bf16.msra.mxu0 %v711
    %734 = vmatprep.subr.bf16.mxu0 0
    %735 = vmatpush1.bf16.msra.mxu0 %v710
    %736 = vmatprep.subr.bf16.mxu0 0
    %737 = vmatpush1.bf16.msra.mxu0 %v709
    %738 = vmatprep.subr.bf16.mxu0 0
    %739 = vmatpush1.bf16.msra.mxu0 %v708
    %740 = vmatprep.subr.bf16.mxu0 0
    %741 = vmatpush2.bf16.msra.mxu0 0
    %742 = vmatprep.subr.bf16.mxu0 0
    %743 = vmatpush2.bf16.msra.mxu0 0
    %744 = vmatprep.subr.bf16.mxu0 0
    %745 = vmatpush2.bf16.msra.mxu0 0
    %746 = vmatprep.subr.bf16.mxu0 0
    %747 = vmatpush2.bf16.msra.mxu0 0
    %748 = vmatprep.subr.bf16.mxu0 0
    %749 = vmatpush2.bf16.msra.mxu0 0
    %750 = vmatprep.subr.bf16.mxu0 0
    %751 = vmatpush2.bf16.msra.mxu0 0
    %752 = vmatprep.subr.bf16.mxu0 0
    %753 = vmatpush2.bf16.msra.mxu0 0
    %754 = vmatprep.subr.bf16.mxu0 0
    %755 = vmatpush2.bf16.msra.mxu0 0
    %756 = vmatprep.mubr.bf16.mxu0 0
    %757 = vmatmul.mubr.bf16.gmra.mxu0 %v652
    %v758 = vpop.f32.mrf.mxu0
    %v759 = vadd.f32 %v674, %v758
    %v760 = vpop.f32.mrf.mxu0
    %v761 = vpop.f32.mrf.mxu0
    %v762 = vpop.f32.mrf.mxu0
    %763 = vdwg.mxu0
    %764 = vst [vmem:[%s11] sm:$0xff] %v759
    // Predicated region
    $region54: #{resnet_like_forward.1} parent=1 // pred_check
      _
    $region55: #{resnet_like_forward.1} parent=1 // pred_check_branch
      %766 = sbr.rel (0) target = $region57
    $region56: #{resnet_like_forward.1} parent=1 // pred_region
      _
    $region57: #{resnet_like_forward.1} parent=1 // pred_fallthru
      _
    // Predicated region
    $region58: #{resnet_like_forward.1} parent=1 // pred_check
      _
    $region59: #{resnet_like_forward.1} parent=1 // pred_check_branch
      %768 = sbr.rel (0) target = $region61
    $region60: #{resnet_like_forward.1} parent=1 // pred_region
      _
    $region61: #{resnet_like_forward.1} parent=1 // pred_fallthru
      _
    %769 = vsyncpa [#allocation3], 1
    %770 = vsyncpa [#allocation5], 1

</llo_original>
